<compile_context>
chip_gen: v6e
topology: v6e:2x2x1
jax: 0.10.0
libtpu: 0.0.40
codegen_flags: <defaults>
</compile_context>

<pallas_src>
import jax
import jax.numpy as jnp
from jax import lax
from jax.experimental import pallas as pl
from jax.experimental.pallas import tpu as pltpu


def _round_up(x, m):
    return ((x + m - 1) // m) * m


def _cdiv(a, b):
    return (a + b - 1) // b


def _attn_softmax_kernel(x_ref, hl_ref, w_ref, o_ref):
    # x_ref : (1, tm, de_emb)  f32  -- decoder-embedding row tile
    # hl_ref: (1, 1, L_pad)    f32  -- hidden logits + bias, mask (-inf) baked in
    # w_ref : (de_emb, L_pad)  bf16 -- per-token half of the Linear (grid-invariant)
    # o_ref : (1, tm, L_pad)   bf16 -- softmax probabilities
    x = x_ref[0].astype(jnp.bfloat16)                       # cast on-chip; xs stays f32 in HBM
    logits = jnp.dot(x, w_ref[...], preferred_element_type=jnp.float32)
    logits = logits + hl_ref[0]                             # (1, L_pad) broadcast; carries the -inf mask

    # Softmax over the last dim, all in f32.
    m = jnp.max(logits, axis=-1, keepdims=True)
    e = jnp.exp(logits - m)
    s = jnp.sum(e, axis=-1, keepdims=True)
    o_ref[0] = (e * pl.reciprocal(s, approx=True)).astype(o_ref.dtype)


def self_decoder_attention(xs, x_lens, hidden, w, bias, max_seq_len, *,
                           tm=512, out_dtype=jnp.bfloat16):
    """xs: (B, T, de_emb) f32; x_lens: (B,) int; hidden: tuple of (1, B, en_hidden);
    w: (max_seq_len, de_emb + 2*en_hidden) [nn.Linear weight layout]; bias: (max_seq_len,)."""
    B, T, de_emb = xs.shape
    L = max_seq_len
    L_pad = _round_up(L, 128)                 # lane-dense output slab (== L when L % 128 == 0)

    # Row tile: as large as T allows (multiple of 8), but make sure the grid has
    # at least 2 steps so both v7x TensorCores get work for small-batch shapes.
    tm = max(8, min(tm, _round_up(T, 8)))
    if B * _cdiv(T, tm) < 2 and T > 8:
        tm = _round_up(_cdiv(T, 2), 8)
    n_t = _cdiv(T, tm)                        # ragged edge blocks handled by Pallas

    w_t = jnp.transpose(w)                    # (D_total, L)
    w_x = w_t[:de_emb, :]                     # per-token half of the Linear
    w_h = w_t[de_emb:, :]                     # hidden half of the Linear

    # Hidden projection + bias: once per batch row, in plain JAX (tiny: B x L),
    # with the length mask AND the lane-padding mask folded in as -inf.
    h_cat = jnp.concatenate(hidden, axis=2)[0]                       # (B, 2*en_hidden)
    hlogits = (
        jnp.dot(h_cat.astype(jnp.float32), w_h.astype(jnp.float32),
                precision=lax.Precision.HIGHEST)
        + bias.astype(jnp.float32)
    )                                                                # (B, L)
    hlogits = jnp.pad(hlogits, ((0, 0), (0, L_pad - L)))             # pad value irrelevant (masked below)
    col = jnp.arange(L_pad, dtype=jnp.int32)[None, :]
    keep = (col < x_lens.astype(jnp.int32)[:, None]) & (col < L)     # pad cols always masked
    hlogits = jnp.where(keep, hlogits, -jnp.inf).reshape(B, 1, L_pad)

    w_x_p = jnp.pad(w_x, ((0, 0), (0, L_pad - L))).astype(jnp.bfloat16)

    out = pl.pallas_call(
        _attn_softmax_kernel,
        out_shape=jax.ShapeDtypeStruct((B, T, L_pad), out_dtype),
        grid_spec=pltpu.PrefetchScalarGridSpec(
            num_scalar_prefetch=0,
            grid=(B, n_t),
            in_specs=[
                pl.BlockSpec((1, tm, de_emb), lambda b, i: (b, i, 0)),
                pl.BlockSpec((1, 1, L_pad),   lambda b, i: (b, 0, 0)),
                # Constant block index => DMA'd once, resident across the grid.
                pl.BlockSpec((de_emb, L_pad), lambda b, i: (0, 0)),
            ],
            out_specs=pl.BlockSpec((1, tm, L_pad), lambda b, i: (b, i, 0)),
        ),
        compiler_params=pltpu.CompilerParams(
            dimension_semantics=("parallel", "parallel"),
            # Headroom for tm=512..1024 + resident bf16 W_x at production sizes,
            # while staying inside v7x's 64 MiB physical VMEM.
            vmem_limit_bytes=48 * 1024 * 1024,
        ),
    )(xs, hlogits, w_x_p)

    # Only the lane-padding (if any) is sliced away; no T slice, no T padding.
    return out if L_pad == L else out[:, :, :L]


def _reference(xs, x_lens, hidden, w, bias, max_seq_len):
    """Pure-f32 mirror of the PyTorch module."""
    B, T, _ = xs.shape
    h_cat = jnp.concatenate(hidden, axis=2)
    h_b = jnp.broadcast_to(jnp.transpose(h_cat, (1, 0, 2)), (B, T, h_cat.shape[-1]))
    feat = jnp.concatenate([xs, h_b], axis=-1)
    logits = jnp.einsum("btd,ld->btl", feat, w, precision=lax.Precision.HIGHEST) + bias
    idx = jnp.arange(max_seq_len, dtype=jnp.float32)
    mask = idx[None, None, :] < x_lens.astype(jnp.float32)[:, None, None]
    logits = jnp.where(mask, logits, -jnp.inf)
    return jax.nn.softmax(logits, axis=-1)


if __name__ == "__main__":
    # Small deterministic config.
    B, T = 2, 8
    en_hidden_size = 16
    de_embedding_size = 32
    max_seq_len = 16
    D_total = 2 * en_hidden_size + de_embedding_size

    key = jax.random.PRNGKey(0)
    k_xs, k_h0, k_h1, k_w, k_b = jax.random.split(key, 5)

    xs = jax.random.normal(k_xs, (B, T, de_embedding_size), dtype=jnp.float32)
    hidden = (jax.random.normal(k_h0, (1, B, en_hidden_size), dtype=jnp.float32),
              jax.random.normal(k_h1, (1, B, en_hidden_size), dtype=jnp.float32))
    # NOTE: x_len == 0 would give an all -inf row (NaN), same as the PyTorch module.
    x_lens = jnp.array([max_seq_len, max_seq_len // 2], dtype=jnp.int32)

    # nn.Linear(in=D_total, out=max_seq_len): weight (L, D), bias (L,)
    w = 0.1 * jax.random.normal(k_w, (max_seq_len, D_total), dtype=jnp.float32)
    b = 0.1 * jax.random.normal(k_b, (max_seq_len,), dtype=jnp.float32)

    out = self_decoder_attention(xs, x_lens, hidden, w, b, max_seq_len)
    out = jax.block_until_ready(out)
    assert out.shape == (B, T, max_seq_len)

    out_f32 = out.astype(jnp.float32)

    # Masked positions (l >= x_len) must be exactly zero probability.
    assert bool(jnp.all(out_f32[1, :, max_seq_len // 2:] == 0.0)), "mask leak"
    # Each row is a probability distribution.
    assert bool(jnp.all(jnp.abs(out_f32.sum(-1) - 1.0) < 2e-2)), "row sums off"

    # Semantic check vs the pure-f32 PyTorch-equivalent reference (tolerance covers
    # bf16 MXU operands, bf16 output, and the EUP approx reciprocal).
    ref = _reference(xs, x_lens, hidden, w, b, max_seq_len)
    assert jnp.allclose(out_f32, ref, atol=2e-2, rtol=2e-2), "mismatch vs f32 reference"

    print("KERNEL_OK")
</pallas_src>

<mosaic_0001>
module attributes {stable_mosaic.version = 11 : i64} {
  func.func @_attn_softmax_kernel(%arg0: i32, %arg1: i32, %arg2: memref<1x8x32xf32, #tpu.memory_space<vmem>>, %arg3: memref<1x1x128xf32, #tpu.memory_space<vmem>>, %arg4: memref<32x128xbf16, #tpu.memory_space<vmem>>, %arg5: memref<1x8x128xbf16, #tpu.memory_space<vmem>>) attributes {dimension_semantics = [#tpu.dimension_semantics<parallel>, #tpu.dimension_semantics<parallel>], iteration_bounds = array<i64: 2, 1>, scalar_prefetch = 0 : i64, scratch_operands = 0 : i64, tpu.core_type = #tpu.core_type<tc>, window_params = [{transform_indices = @transform_0, window_bounds = array<i64: 1, 8, 32>}, {transform_indices = @transform_1, window_bounds = array<i64: 1, 1, 128>}, {pipeline_mode = #tpu.pipeline_mode<synchronous>, transform_indices = @transform_2, window_bounds = array<i64: 32, 128>}, {transform_indices = @transform_3, window_bounds = array<i64: 1, 8, 128>}]} {
    %c0 = arith.constant 0 : index
    %c0_0 = arith.constant 0 : index
    %c0_1 = arith.constant 0 : index
    %0 = vector.load %arg2[%c0, %c0_0, %c0_1] : memref<1x8x32xf32, #tpu.memory_space<vmem>>, vector<1x8x32xf32>
    %1 = vector.shape_cast %0 : vector<1x8x32xf32> to vector<8x32xf32>
    %2 = arith.truncf %1 : vector<8x32xf32> to vector<8x32xbf16>
    %c0_2 = arith.constant 0 : index
    %c0_3 = arith.constant 0 : index
    %3 = vector.load %arg4[%c0_2, %c0_3] : memref<32x128xbf16, #tpu.memory_space<vmem>>, vector<32x128xbf16>
    %cst = arith.constant dense<0.000000e+00> : vector<8x128xf32>
    %4 = tpu.matmul %2, %3, %cst {dimension_numbers = #tpu.dot_dimension_numbers<[1], [0], [0], [1], [0, 0, 1, 1], [], []>} : vector<8x32xbf16>, vector<32x128xbf16>, vector<8x128xf32> -> vector<8x128xf32>
    %c0_4 = arith.constant 0 : index
    %c0_5 = arith.constant 0 : index
    %c0_6 = arith.constant 0 : index
    %5 = vector.load %arg3[%c0_4, %c0_5, %c0_6] : memref<1x1x128xf32, #tpu.memory_space<vmem>>, vector<1x1x128xf32>
    %6 = vector.shape_cast %5 : vector<1x1x128xf32> to vector<1x128xf32>
    %7 = vector.broadcast %6 : vector<1x128xf32> to vector<8x128xf32>
    %8 = arith.addf %4, %7 : vector<8x128xf32>
    %cst_7 = arith.constant dense<0xFF800000> : vector<8xf32>
    %9 = vector.multi_reduction <maximumf>, %8, %cst_7 [1] : vector<8x128xf32> to vector<8xf32>
    %10 = vector.shape_cast %9 : vector<8xf32> to vector<8x1xf32>
    %11 = vector.broadcast %10 : vector<8x1xf32> to vector<8x128xf32>
    %12 = arith.subf %8, %11 : vector<8x128xf32>
    %13 = math.exp %12 : vector<8x128xf32>
    %cst_8 = arith.constant dense<0.000000e+00> : vector<8xf32>
    %14 = vector.multi_reduction <add>, %13, %cst_8 [1] : vector<8x128xf32> to vector<8xf32>
    %15 = vector.shape_cast %14 : vector<8xf32> to vector<8x1xf32>
    %16 = tpu.reciprocal %15 {approx = true} : vector<8x1xf32> -> vector<8x1xf32>
    %17 = vector.broadcast %16 : vector<8x1xf32> to vector<8x128xf32>
    %18 = arith.mulf %13, %17 : vector<8x128xf32>
    %19 = arith.truncf %18 : vector<8x128xf32> to vector<8x128xbf16>
    %c0_9 = arith.constant 0 : index
    %c0_10 = arith.constant 0 : index
    %c0_11 = arith.constant 0 : index
    %20 = vector.load %arg5[%c0_9, %c0_10, %c0_11] : memref<1x8x128xbf16, #tpu.memory_space<vmem>>, vector<1x8x128xbf16>
    %21 = vector.shape_cast %20 : vector<1x8x128xbf16> to vector<8x128xbf16>
    %22 = vector.shape_cast %19 : vector<8x128xbf16> to vector<1x8x128xbf16>
    tpu.vector_store %arg5[%c0_9, %c0_10, %c0_11], %22 {strides = array<i32>} : memref<1x8x128xbf16, #tpu.memory_space<vmem>>, vector<1x8x128xbf16>,
    return
  }
  func.func @transform_0(%arg0: i32, %arg1: i32) -> (i32, i32, i32) {
    %c0_i32 = arith.constant 0 : i32
    %c0_i32_0 = arith.constant 0 : i32
    return %arg0, %arg1, %c0_i32 : i32, i32, i32
  }
  func.func @transform_1(%arg0: i32, %arg1: i32) -> (i32, i32, i32) {
    %c0_i32 = arith.constant 0 : i32
    %c0_i32_0 = arith.constant 0 : i32
    %c0_i32_1 = arith.constant 0 : i32
    return %arg0, %c0_i32, %c0_i32_0 : i32, i32, i32
  }
  func.func @transform_2(%arg0: i32, %arg1: i32) -> (i32, i32) {
    %c0_i32 = arith.constant 0 : i32
    %c0_i32_0 = arith.constant 0 : i32
    %c0_i32_1 = arith.constant 0 : i32
    return %c0_i32, %c0_i32_0 : i32, i32
  }
  func.func @transform_3(%arg0: i32, %arg1: i32) -> (i32, i32, i32) {
    %c0_i32 = arith.constant 0 : i32
    %c0_i32_0 = arith.constant 0 : i32
    return %arg0, %arg1, %c0_i32 : i32, i32, i32
  }
}

</mosaic_0001>

<llo_original>
// kernel: tpu_custom_call.1
$region0: #{tpu_custom_call.1}
  #allocation0 [shape = 'u32[]', space=smem, size = 0x4, offset = 0x4, fixed_abs, tag = 'smem constant byte address 0x4 - core index']
  #allocation1 [shape = 'u32[144,128]{1,0:T(1,128)}', space=vmem, size = 0x12000, scoped, tag = 'internal scratch']
  %s0 = inlined_call_operand.hbm [shape: f32[2,8,32], index: 0, kind: input, shape index: {}]
  %s1 = inlined_call_operand.hbm [shape: f32[2,1,128], index: 1, kind: input, shape index: {}]
  %s2 = inlined_call_operand.hbm [shape: bf16[32,128], index: 2, kind: input, shape index: {}]
  %s3 = inlined_call_operand.hbm [shape: bf16[2,8,128], index: 3, kind: output, shape index: {}]
  %s4 = sld [smem:[#allocation0]]
  $region57: #{tpu_custom_call.1} parent=0
    _
  %s6 = ssub.s32 1, %s4
  %s7 = scalar_select 0, %s6, %s4
  $region1: #{tpu_custom_call.1} parent=0
    #allocation2 [shape = 'u8[8192]{0}', space=vmem, size = 0x2000, scoped, tag = 'input window, operand 0']
    #allocation3 [shape = 's32[2]{0}', space=sflag, size = 0x8, scoped, tag = 'scoped memory for tpu_custom_call.1']
    #allocation4 [shape = 's32[2]{0}', space=sflag, size = 0x8, scoped, tag = 'scoped memory for tpu_custom_call.1']
    #allocation5 [shape = 'u8[1024]{0}', space=vmem, size = 0x400, scoped, tag = 'input window, operand 1']
    #allocation6 [shape = 's32[2]{0}', space=sflag, size = 0x8, scoped, tag = 'scoped memory for tpu_custom_call.1']
    #allocation7 [shape = 'u8[8192]{0}', space=vmem, size = 0x2000, scoped, tag = 'input window, operand 2, single buffered']
    #allocation8 [shape = 'u8[4096]{0}', space=vmem, size = 0x1000, scoped, tag = 'output window, operand 0']
    %8 = vsyncpa [#allocation3], 0
    %s9 = scalar_lea.sflag [#allocation3], 1
    %10 = vsyncpa %s9, 0
    %11 = vsyncpa [#allocation6], 0
    %s12 = scalar_lea.sflag [#allocation6], 1
    %13 = vsyncpa %s12, 0
    %14 = vsyncpa [#allocation4], 0
    %s15 = scalar_lea.sflag [#allocation4], 1
    %16 = vsyncpa %s15, 0
    loop: start=0, step=1, limit=4
    $region2: #{tpu_custom_call.1} parent=1 // loop_pre_header
      _
    $region3: #{tpu_custom_call.1} parent=1 // loop_header
      %s18 = sphi 0, %s22
      %p19 = scmp.ge.s32.totalorder %s18, 4
      %s25 = sphi 0, %s37
      %s26 = sphi 0, %s33
      %s27 = sphi 0, %s25
      %s28 = sphi 0, %s26
      %s29 = sphi 0, %s27
      %s30 = sphi 0, %s28
      %s42 = sphi 0, %s44
      %s45 = sphi 0, %s42
      %s46 = sphi 0, %s45
      %s62 = sphi 0, %s46
      %s68 = sphi 0, %s70
      %s71 = sphi 0, %s68
      %s72 = sphi 0, %s71
      %s88 = sphi 0, %s72
      %s92 = sphi 0, %s92
      %s94 = sphi 0, %s92
      %s95 = sphi 0, %s94
      %s109 = sphi 0, %s95
      %s117 = sphi 0, %s119
      %s120 = sphi 0, %s117
      %s121 = sphi 0, %s120
      %s137 = sphi 0, %s121
    $region4: #{tpu_custom_call.1} parent=1 // loop_header_branch
      %21 = sbr.rel (%p19) target = $region8
    $region5: #{tpu_custom_call.1} parent=1 // loop_body
      %s23 = ssub.s32 %s18, 1
      %s24 = ssub.s32 %s18, 2
      %s31 = sadd.s32 1, %s26
      %p32 = scmp.ge.s32.totalorder %s31, 1
      %s33 = scalar_select %p32, 0, %s31
      %s34 = sadd.s32 1, %s25
      %s35 = scalar_select %p32, %s34, %s25
      %p36 = scmp.ge.s32.totalorder %s35, 2
      %s37 = scalar_select %p36, 0, %s35
      %s38 = ssub.s32 %s25, %s37
      %s39 = ssub.s32 %s26, %s33
      %s40 = sor.u32 %s38, %s39
      %p41 = scmp.eq.s32.totalorder %s40, 0
      %s43 = sadd.s32 %s42, 1
      %s44 = scalar_select %p41, %s42, %s43
      %p47 = pneg %p41
      %p48 = scmp.eq.s32.totalorder %s18, 1
      %p49 = por %p47, %p48
      %p50 = scmp.ne.s32.totalorder %s42, %s45
      %p51 = scmp.eq.s32.totalorder %s18, 0
      %p52 = por %p50, %p51
      %p53 = scmp.ne.s32.totalorder %s42, %s45
      %p54 = scmp.eq.s32.totalorder %s23, 1
      %p55 = por %p53, %p54
      %p56 = scmp.ne.s32.totalorder %s45, %s46
      %p57 = scmp.eq.s32.totalorder %s23, 0
      %p58 = por %p56, %p57
      %p59 = scmp.ne.s32.totalorder %s45, %s46
      %p60 = scmp.eq.s32.totalorder %s24, 1
      %p61 = por %p59, %p60
      %p63 = scmp.ne.s32.totalorder %s46, %s62
      %p64 = scmp.eq.s32.totalorder %s24, 0
      %p65 = por %p63, %p64
      %s66 = ssub.s32 %s25, %s37
      %p67 = scmp.eq.s32.totalorder %s66, 0
      %s69 = sadd.s32 %s68, 1
      %s70 = scalar_select %p67, %s68, %s69
      %p73 = pneg %p67
      %p74 = scmp.eq.s32.totalorder %s18, 1
      %p75 = por %p73, %p74
      %p76 = scmp.ne.s32.totalorder %s68, %s71
      %p77 = scmp.eq.s32.totalorder %s18, 0
      %p78 = por %p76, %p77
      %p79 = scmp.ne.s32.totalorder %s68, %s71
      %p80 = scmp.eq.s32.totalorder %s23, 1
      %p81 = por %p79, %p80
      %p82 = scmp.ne.s32.totalorder %s71, %s72
      %p83 = scmp.eq.s32.totalorder %s23, 0
      %p84 = por %p82, %p83
      %p85 = scmp.ne.s32.totalorder %s71, %s72
      %p86 = scmp.eq.s32.totalorder %s24, 1
      %p87 = por %p85, %p86
      %p89 = scmp.ne.s32.totalorder %s72, %s88
      %p90 = scmp.eq.s32.totalorder %s24, 0
      %p91 = por %p89, %p90
      %s93 = sadd.s32 %s92, 1
      %p96 = scmp.eq.s32.totalorder %s18, 1
      %p97 = scmp.ne.s32.totalorder %s92, %s94
      %p98 = scmp.eq.s32.totalorder %s18, 0
      %p99 = por %p97, %p98
      %p100 = scmp.ne.s32.totalorder %s92, %s94
      %p101 = scmp.eq.s32.totalorder %s23, 1
      %p102 = por %p100, %p101
      %p103 = scmp.ne.s32.totalorder %s94, %s95
      %p104 = scmp.eq.s32.totalorder %s23, 0
      %p105 = por %p103, %p104
      %p106 = scmp.ne.s32.totalorder %s94, %s95
      %p107 = scmp.eq.s32.totalorder %s24, 1
      %p108 = por %p106, %p107
      %p110 = scmp.ne.s32.totalorder %s95, %s109
      %p111 = scmp.eq.s32.totalorder %s24, 0
      %p112 = por %p110, %p111
      %s113 = ssub.s32 %s25, %s37
      %s114 = ssub.s32 %s26, %s33
      %s115 = sor.u32 %s113, %s114
      %p116 = scmp.eq.s32.totalorder %s115, 0
      %s118 = sadd.s32 %s117, 1
      %s119 = scalar_select %p116, %s117, %s118
      %p122 = pneg %p116
      %p123 = scmp.eq.s32.totalorder %s18, 1
      %p124 = por %p122, %p123
      %p125 = scmp.ne.s32.totalorder %s117, %s120
      %p126 = scmp.eq.s32.totalorder %s18, 0
      %p127 = por %p125, %p126
      %p128 = scmp.ne.s32.totalorder %s117, %s120
      %p129 = scmp.eq.s32.totalorder %s23, 1
      %p130 = por %p128, %p129
      %p131 = scmp.ne.s32.totalorder %s120, %s121
      %p132 = scmp.eq.s32.totalorder %s23, 0
      %p133 = por %p131, %p132
      %p134 = scmp.ne.s32.totalorder %s120, %s121
      %p135 = scmp.eq.s32.totalorder %s24, 1
      %p136 = por %p134, %p135
      %p138 = scmp.ne.s32.totalorder %s121, %s137
      %p139 = scmp.eq.s32.totalorder %s24, 0
      %p140 = por %p138, %p139
      %p141 = scmp.le.s32.totalorder 1, %s18
      %p142 = scmp.lt.s32.totalorder %s18, 3
      %p143 = pnand %p141, %p142
      %p144 = pneg %p143
      // Predicated region
      $region9: #{tpu_custom_call.1} parent=5 // pred_check
        _
      $region10: #{tpu_custom_call.1} parent=5 // pred_check_branch
        %146 = sbr.rel (%p143) target = $region12
      $region11: #{tpu_custom_call.1} parent=5 // pred_region
        %s147 = ssub.s32 %s18, 1
        // Predicated region
        $region13: #{tpu_custom_call.1} parent=11 // pred_check
          %p148 = pneg %p105
        $region14: #{tpu_custom_call.1} parent=11 // pred_check_branch
          %150 = sbr.rel (%p148) target = $region16
        $region15: #{tpu_custom_call.1} parent=11 // pred_region
          %s152 = ssub.s32 256, 256
          %153 = vsyncadd [#allocation6], %s152
          %s154 = sshll.u32 [#allocation7], 4
          %s155 = int_to_ptr.vmem [resolvable:$true] %s154
          %160 = dma.hbm_to_vmem [thread:$0]  %s2, 256, %s155, [#allocation6], 64, 64, 4
        $region16: #{tpu_custom_call.1} parent=11 // pred_fallthru
          _
      $region12: #{tpu_custom_call.1} parent=5 // pred_fallthru
        _
      %p161 = scmp.lt.s32.totalorder %s18, 2
      // Predicated region
      $region17: #{tpu_custom_call.1} parent=5 // pred_check
        %p162 = pneg %p161
      $region18: #{tpu_custom_call.1} parent=5 // pred_check_branch
        %164 = sbr.rel (%p162) target = $region20
      $region19: #{tpu_custom_call.1} parent=5 // pred_region
        // Predicated region
        $region21: #{tpu_custom_call.1} parent=19 // pred_check
          %p165 = pneg %p52
        $region22: #{tpu_custom_call.1} parent=19 // pred_check_branch
          %167 = sbr.rel (%p165) target = $region24
        $region23: #{tpu_custom_call.1} parent=19 // pred_region
          %s168 = sand.u32 %s42, 1
          %s169 = scalar_lea.sflag [#allocation3], %s168
          %s170 = sand.u32 %s42, 1
          %s171 = smul.addr %s170, 8
          %s172 = scalar_lea.vmem [#allocation2], %s171
          %s174 = ssub.s32 128, 128
          %175 = vsyncadd %s169, %s174
          %s176 = sadd.s32 %s26, %s25
          %s177 = smul.addr %s176, 128
          %s178 = scalar_lea.hbm %s0, %s177
          %s180 = sshll.u32 %s172, 4
          %s181 = int_to_ptr.vmem [resolvable:$true] %s180
          %183 = dma.hbm_to_vmem [thread:$0]  %s178, 128, %s181, %s169
        $region24: #{tpu_custom_call.1} parent=19 // pred_fallthru
          _
        // Predicated region
        $region25: #{tpu_custom_call.1} parent=19 // pred_check
          %p184 = pneg %p78
        $region26: #{tpu_custom_call.1} parent=19 // pred_check_branch
          %186 = sbr.rel (%p184) target = $region28
        $region27: #{tpu_custom_call.1} parent=19 // pred_region
          %s187 = sand.u32 %s18, 1
          %s188 = scalar_lea.sflag [#allocation6], %s187
          %s189 = sand.u32 %s68, 1
          %s190 = scalar_lea.vmem [#allocation5], %s189
          %s192 = ssub.s32 16, 16
          %193 = vsyncadd %s188, %s192
          %s194 = smul.addr %s25, 16
          %s195 = scalar_lea.hbm %s1, %s194
          %s197 = sshll.u32 %s190, 4
          %s198 = int_to_ptr.vmem [resolvable:$true] %s197
          %200 = dma.hbm_to_vmem [thread:$0]  %s195, 16, %s198, %s188
        $region28: #{tpu_custom_call.1} parent=19 // pred_fallthru
          _
      $region20: #{tpu_custom_call.1} parent=5 // pred_fallthru
        _
      %p201 = scmp.le.s32.totalorder 1, %s18
      %p202 = scmp.lt.s32.totalorder %s18, 3
      %p203 = pnand %p201, %p202
      %p204 = pneg %p203
      // Predicated region
      $region29: #{tpu_custom_call.1} parent=5 // pred_check
        _
      $region30: #{tpu_custom_call.1} parent=5 // pred_check_branch
        %206 = sbr.rel (%p203) target = $region32
      $region31: #{tpu_custom_call.1} parent=5 // pred_region
        %s207 = ssub.s32 %s18, 1
        %s208 = sand.u32 %s45, 1
        %s209 = scalar_lea.sflag [#allocation3], %s208
        %s210 = sand.u32 %s45, 1
        %s211 = smul.addr %s210, 8
        %s212 = scalar_lea.vmem [#allocation2], %s211
        // Predicated region
        $region33: #{tpu_custom_call.1} parent=31 // pred_check
          %p213 = pneg %p58
        $region34: #{tpu_custom_call.1} parent=31 // pred_check_branch
          %215 = sbr.rel (%p213) target = $region36
        $region35: #{tpu_custom_call.1} parent=31 // pred_region
          %216 = dma.done %s209, 128
        $region36: #{tpu_custom_call.1} parent=31 // pred_fallthru
          _
        %s217 = sand.u32 %s23, 1
        %s218 = scalar_lea.sflag [#allocation6], %s217
        %s219 = sand.u32 %s71, 1
        %s220 = scalar_lea.vmem [#allocation5], %s219
        // Predicated region
        $region37: #{tpu_custom_call.1} parent=31 // pred_check
          %p221 = pneg %p84
        $region38: #{tpu_custom_call.1} parent=31 // pred_check_branch
          %223 = sbr.rel (%p221) target = $region40
        $region39: #{tpu_custom_call.1} parent=31 // pred_region
          %224 = dma.done %s218, 16
        $region40: #{tpu_custom_call.1} parent=31 // pred_fallthru
          _
        // Predicated region
        $region41: #{tpu_custom_call.1} parent=31 // pred_check
          %p225 = pneg %p105
        $region42: #{tpu_custom_call.1} parent=31 // pred_check_branch
          %227 = sbr.rel (%p225) target = $region44
        $region43: #{tpu_custom_call.1} parent=31 // pred_region
          %228 = dma.done [#allocation6], 256
        $region44: #{tpu_custom_call.1} parent=31 // pred_fallthru
          _
        %s229 = sand.u32 %s45, 1
        %s230 = scalar_lea.sflag [#allocation3], %s229
        %s231 = sand.u32 %s45, 1
        %s232 = smul.addr %s231, 8
        %s233 = scalar_lea.vmem [#allocation2], %s232
        %p234 = pneg %p58
        %p235 = pneg %p55
        %s236 = sand.u32 %s23, 1
        %s237 = scalar_lea.sflag [#allocation6], %s236
        %s238 = sand.u32 %s71, 1
        %s239 = scalar_lea.vmem [#allocation5], %s238
        %p240 = pneg %p84
        %p241 = pneg %p81
        %p242 = pneg %p105
        %p243 = pneg %p102
        %p244 = pneg %p133
        %p245 = pneg %p130
        %s246 = sand.u32 %s120, 1
        %s247 = scalar_lea.sflag [#allocation4], %s246
        %s248 = sand.u32 %s120, 1
        %s249 = smul.addr %s248, 4
        %s250 = scalar_lea.vmem [#allocation8], %s249
        %v252 = vld [vmem:[%s212] sm:$0xff]
        %v253 = vpack.c.bf16 %v252, %v252
        %v254 = vld [vmem:[#allocation7] sm:$0xf]
        %v255 = vld [vmem:[#allocation7 + $0x4] sm:$0xf]
        %v256 = vld [vmem:[#allocation7 + $0x8] sm:$0xf]
        %v257 = vld [vmem:[#allocation7 + $0xc] sm:$0xf]
        %v258 = vld [vmem:[%s220] sm:$0x1]
        %v260 = vlaneseq
        %v261 = vshrl.u32 %v260, 7
        %v262 = vsub.s32 0, %v261
        %v263 = vrot.slane %v258, %v262
        %v269 = vunpack.c.l.b16 %v254
        %v270 = vunpack.c.l.b16 %v255
        %v271 = vunpack.c.l.b16 %v256
        %v272 = vunpack.c.l.b16 %v257
        %v273 = vpack.c.b16 %v270, %v269
        %v274 = vpack.c.b16 %v272, %v271
        %vm277 = vcmask 261120
        %v279 = vsel %vm277, %v253, 0
        %281 = vmatprep.subr.bf16.mxu0 0
        %282 = vmatpush1.bf16.msra.mxu0 0
        %283 = vmatprep.subr.bf16.mxu0 0
        %284 = vmatpush1.bf16.msra.mxu0 0
        %285 = vmatprep.subr.bf16.mxu0 0
        %286 = vmatpush1.bf16.msra.mxu0 0
        %287 = vmatprep.subr.bf16.mxu0 0
        %288 = vmatpush1.bf16.msra.mxu0 0
        %289 = vmatprep.subr.bf16.mxu0 0
        %290 = vmatpush1.bf16.msra.mxu0 0
        %291 = vmatprep.subr.bf16.mxu0 0
        %292 = vmatpush1.bf16.msra.mxu0 0
        %293 = vmatprep.subr.bf16.mxu0 0
        %294 = vmatpush1.bf16.msra.mxu0 %v274
        %295 = vmatprep.subr.bf16.mxu0 0
        %296 = vmatpush1.bf16.msra.mxu0 %v273
        %297 = vmatprep.subr.bf16.mxu0 0
        %298 = vmatpush2.bf16.msra.mxu0 0
        %299 = vmatprep.subr.bf16.mxu0 0
        %300 = vmatpush2.bf16.msra.mxu0 0
        %301 = vmatprep.subr.bf16.mxu0 0
        %302 = vmatpush2.bf16.msra.mxu0 0
        %303 = vmatprep.subr.bf16.mxu0 0
        %304 = vmatpush2.bf16.msra.mxu0 0
        %305 = vmatprep.subr.bf16.mxu0 0
        %306 = vmatpush2.bf16.msra.mxu0 0
        %307 = vmatprep.subr.bf16.mxu0 0
        %308 = vmatpush2.bf16.msra.mxu0 0
        %309 = vmatprep.subr.bf16.mxu0 0
        %310 = vmatpush2.bf16.msra.mxu0 0
        %311 = vmatprep.subr.bf16.mxu0 0
        %312 = vmatpush2.bf16.msra.mxu0 0
        %313 = vmatprep.mubr.bf16.mxu0 0
        %314 = vmatmul.mubr.bf16.gmra.mxu0 %v279
        %v315 = vpop.f32.mrf.mxu0
        %v316 = vadd.f32 %v263, %v315
        %v317 = vpop.f32.mrf.mxu0
        %v318 = vpop.f32.mrf.mxu0
        %v319 = vpop.f32.mrf.mxu0
        %320 = vdwg.mxu0
        %321 = vmax.xlane.f32.xlu0 %v316
        %v322 = vpop.xlane.xlu0 %321
        %v323 = vsub.f32 %v316, %v322
        %v324 = vmul.f32 %v323, 1.442695
        %v325 = vpow.pop %v324
        %326 = vadd.xlane.f32.xlu0 %v325
        %v327 = vpop.xlane.xlu0 %326
        %v328 = vrcp.pop %v327
        %v329 = vmul.f32 %v325, %v328
        %v330 = vpack.c.bf16 %v329, %v329
        %331 = vst [vmem:[%s250] sm:$0xf] %v330
        %s332 = sand.u32 %s120, 1
        %s333 = scalar_lea.sflag [#allocation4], %s332
        %s334 = sand.u32 %s120, 1
        %s335 = smul.addr %s334, 4
        %s336 = scalar_lea.vmem [#allocation8], %s335
        // Predicated region
        $region45: #{tpu_custom_call.1} parent=31 // pred_check
          %p337 = pneg %p130
        $region46: #{tpu_custom_call.1} parent=31 // pred_check_branch
          %339 = sbr.rel (%p337) target = $region48
        $region47: #{tpu_custom_call.1} parent=31 // pred_region
          %s341 = ssub.s32 64, 64
          %342 = vsyncadd %s333, %s341
          %s343 = sadd.s32 %s28, %s27
          %s344 = smul.addr %s343, 64
          %s345 = scalar_lea.hbm %s3, %s344
          %s347 = sshll.u32 %s336, 4
          %s348 = int_to_ptr.vmem [resolvable:$true] %s347
          %350 = dma.vmem_to_hbm [thread:$0]  %s348, 64, %s345, %s333
        $region48: #{tpu_custom_call.1} parent=31 // pred_fallthru
          _
      $region32: #{tpu_custom_call.1} parent=5 // pred_fallthru
        _
      %p351 = scmp.le.s32.totalorder 2, %s18
      // Predicated region
      $region49: #{tpu_custom_call.1} parent=5 // pred_check
        %p352 = pneg %p351
      $region50: #{tpu_custom_call.1} parent=5 // pred_check_branch
        %354 = sbr.rel (%p352) target = $region52
      $region51: #{tpu_custom_call.1} parent=5 // pred_region
        %s355 = ssub.s32 %s18, 2
        // Predicated region
        $region53: #{tpu_custom_call.1} parent=51 // pred_check
          %p356 = pneg %p136
        $region54: #{tpu_custom_call.1} parent=51 // pred_check_branch
          %358 = sbr.rel (%p356) target = $region56
        $region55: #{tpu_custom_call.1} parent=51 // pred_region
          %s359 = sand.u32 %s121, 1
          %s360 = scalar_lea.sflag [#allocation4], %s359
          %s361 = sand.u32 %s121, 1
          %s362 = smul.addr %s361, 4
          %s363 = scalar_lea.vmem [#allocation8], %s362
          %364 = dma.done %s360, 64
        $region56: #{tpu_custom_call.1} parent=51 // pred_fallthru
          _
      $region52: #{tpu_custom_call.1} parent=5 // pred_fallthru
        _
    $region6: #{tpu_custom_call.1} parent=1 // loop_footer
      %s22 = sadd.s32 1, %s18
    $region7: #{tpu_custom_call.1} parent=1 // loop_footer_branch
      %17 = sbr.rel target = $region3
    $region8: #{tpu_custom_call.1} parent=1 // loop_exit
      _
    %365 = vsyncpa [#allocation3], 1
    %s366 = scalar_lea.sflag [#allocation3], 1
    %367 = vsyncpa %s366, 1
    %368 = vsyncpa [#allocation6], 1
    %s369 = scalar_lea.sflag [#allocation6], 1
    %370 = vsyncpa %s369, 1
    %371 = vsyncpa [#allocation4], 1
    %s372 = scalar_lea.sflag [#allocation4], 1
    %373 = vsyncpa %s372, 1

</llo_original>
